<compile_context>
chip_gen: v7x
topology: tpu7x:2x2x1
jax: 0.10.0
libtpu: 0.0.40
codegen_flags: <defaults>
</compile_context>

<pallas_src>
import jax
import jax.numpy as jnp
import numpy as np
from jax.experimental import pallas as pl
from jax.experimental.pallas import tpu as pltpu


def _lstm_cell(gates, c_prev, H):
    """gates: (B, 4H) in PyTorch (i, f, g, o) order; returns (h_new, c_new)."""
    i_g = jax.nn.sigmoid(gates[:, 0 * H:1 * H])
    f_g = jax.nn.sigmoid(gates[:, 1 * H:2 * H])
    g_g = jnp.tanh(gates[:, 2 * H:3 * H])
    o_g = jax.nn.sigmoid(gates[:, 3 * H:4 * H])
    c_new = f_g * c_prev + i_g * g_g
    h_new = o_g * jnp.tanh(c_new)
    return h_new, c_new


# ----------------------------------------------------------------------------
# Kernel 1: hoisted layer-0 input projection (+ folded bias) for ALL timesteps.
# One (T*Bp, I) @ (I, 4H) matmul fills the MXU M dimension instead of feeding
# it a (B, I) sliver per step, and removes the per-step bias broadcast.
# ----------------------------------------------------------------------------
def _in_proj_kernel(x_ref, w_ref, b_ref, o_ref):
    o_ref[...] = (jnp.dot(x_ref[...], w_ref[...],
                          preferred_element_type=jnp.float32) + b_ref[...])


def input_projection(x2d, w_ih0, b0):
    """x2d: (R, I); w_ih0: (I, 4H); b0: (1, 4H) -> (R, 4H)."""
    R = x2d.shape[0]
    G = w_ih0.shape[1]
    return pl.pallas_call(
        _in_proj_kernel,
        out_shape=jax.ShapeDtypeStruct((R, G), jnp.float32),
    )(x2d, w_ih0, b0)


# ----------------------------------------------------------------------------
# Kernel 2: fused multi-layer LSTM recurrence + FC head.
# Grid iterates over blocks of timesteps (sequential carry); h/c for all layers
# stay resident in VMEM scratch; logits written once on the last grid step.
# ----------------------------------------------------------------------------
def lstm_classifier_forward(x, params, *, time_block=32):
    """x: (batch, seq, input_size) -> logits (batch, num_classes)."""
    B, T, I = x.shape
    lstm_params = params["lstm"]
    L = len(lstm_params)
    H = lstm_params[0][1].shape[0]
    C = params["fc_w"].shape[1]
    G = 4 * H

    # Pad batch to a sublane multiple (8) so (B, *) tiles are sublane-dense.
    Bp = ((B + 7) // 8) * 8

    x_seq = jnp.transpose(x, (1, 0, 2)).astype(jnp.float32)          # (T, B, I)
    if Bp != B:
        x_seq = jnp.pad(x_seq, ((0, 0), (0, Bp - B), (0, 0)))        # (T, Bp, I)

    # --- hoisted layer-0 input projection (bias folded in) -------------------
    w_ih0, w_hh0, b0 = lstm_params[0]
    xproj = input_projection(x_seq.reshape(T * Bp, I), w_ih0, b0)
    xproj = xproj.reshape(T, Bp, G)                                  # (T, Bp, 4H)

    # --- stacked [W_ih; W_hh] for layers >= 1 (one dot per layer per step) ---
    deep_inputs = []
    for (w_ih_l, w_hh_l, b_l) in lstm_params[1:]:
        deep_inputs += [jnp.concatenate([w_ih_l, w_hh_l], axis=0),   # (2H, 4H)
                        b_l]                                         # (1, 4H)
    n_deep = L - 1

    # --- timesteps per grid step: largest divisor of T that fits time_block --
    Tb = 1
    for d in range(1, min(T, time_block) + 1):
        if T % d == 0:
            Tb = d
    n_steps = T // Tb

    def kernel(xproj_ref, whh0_ref, *rest):
        deep_refs = rest[:2 * n_deep]          # (wcat_1, b_1, ..., wcat_{L-1}, b_{L-1})
        wfc_ref = rest[2 * n_deep]
        bfc_ref = rest[2 * n_deep + 1]
        out_ref = rest[2 * n_deep + 2]
        h_scr = rest[2 * n_deep + 3]           # (Bp, L*H), layer-contiguous hidden state
        c_scr = rest[2 * n_deep + 4]           # (Bp, L*H)

        g = pl.program_id(0)

        @pl.when(g == 0)
        def _():
            h_scr[...] = jnp.zeros_like(h_scr)
            c_scr[...] = jnp.zeros_like(c_scr)

        # Statically unrolled inner recurrence over this block's Tb timesteps.
        for tt in range(Tb):
            # Layer 0: input projection precomputed; only h @ W_hh remains.
            gates = xproj_ref[tt] + jnp.dot(
                h_scr[:, 0:H], whh0_ref[...], preferred_element_type=jnp.float32)
            h_new, c_new = _lstm_cell(gates, c_scr[:, 0:H], H)
            h_scr[:, 0:H] = h_new
            c_scr[:, 0:H] = c_new

            # Layers >= 1: [h_{l-1}^t, h_l^{t-1}] is contiguous in h_scr, so the
            # W_ih / W_hh matmuls fuse into a single (Bp, 2H) @ (2H, 4H) dot.
            for l in range(1, L):
                wcat_ref = deep_refs[2 * (l - 1)]
                bl_ref = deep_refs[2 * (l - 1) + 1]
                lo = (l - 1) * H
                gates = (jnp.dot(h_scr[:, lo:lo + 2 * H], wcat_ref[...],
                                 preferred_element_type=jnp.float32)
                         + bl_ref[...])
                h_new, c_new = _lstm_cell(gates, c_scr[:, l * H:(l + 1) * H], H)
                h_scr[:, l * H:(l + 1) * H] = h_new
                c_scr[:, l * H:(l + 1) * H] = c_new

        # Fused classifier head: only the last layer's last-step h is needed.
        @pl.when(g == pl.num_programs(0) - 1)
        def _():
            out_ref[...] = (jnp.dot(h_scr[:, (L - 1) * H:L * H], wfc_ref[...],
                                    preferred_element_type=jnp.float32)
                            + bfc_ref[...])

    in_specs = [
        pl.BlockSpec((Tb, Bp, G), lambda g: (g, 0, 0)),   # xproj block per grid step
        pl.BlockSpec((H, G), lambda g: (0, 0)),           # W_hh layer 0, resident
    ]
    inputs = [xproj, w_hh0]
    for _ in range(n_deep):
        in_specs += [pl.BlockSpec((2 * H, G), lambda g: (0, 0)),   # stacked [W_ih; W_hh]
                     pl.BlockSpec((1, G), lambda g: (0, 0))]       # fused bias
    inputs += deep_inputs
    in_specs += [pl.BlockSpec((H, C), lambda g: (0, 0)),           # FC weight
                 pl.BlockSpec((1, C), lambda g: (0, 0))]           # FC bias
    inputs += [params["fc_w"], params["fc_b"]]

    logits_p = pl.pallas_call(
        kernel,
        out_shape=jax.ShapeDtypeStruct((Bp, C), jnp.float32),
        grid=(n_steps,),
        in_specs=in_specs,
        out_specs=pl.BlockSpec((Bp, C), lambda g: (0, 0)),
        scratch_shapes=[
            pltpu.VMEM((Bp, L * H), jnp.float32),   # h for all layers (contiguous)
            pltpu.VMEM((Bp, L * H), jnp.float32),   # c for all layers
        ],
        compiler_params=pltpu.CompilerParams(
            dimension_semantics=("arbitrary",)),    # time is a sequential carry
    )(*inputs)

    return logits_p[:B]


# ----------------------------------------------------------------------------
# Parameter init mimicking nn.LSTM / nn.Linear uniform(-1/sqrt(H), 1/sqrt(H)).
# ----------------------------------------------------------------------------
def init_params(key, input_size, hidden_size, num_layers, num_classes):
    params = {"lstm": []}
    k = 1.0 / np.sqrt(hidden_size)
    keys = jax.random.split(key, 4 * num_layers + 2)
    for l in range(num_layers):
        in_dim = input_size if l == 0 else hidden_size
        k0, k1, k2, k3 = keys[4 * l:4 * l + 4]
        w_ih = jax.random.uniform(k0, (in_dim, 4 * hidden_size), jnp.float32, -k, k)
        w_hh = jax.random.uniform(k1, (hidden_size, 4 * hidden_size), jnp.float32, -k, k)
        b_ih = jax.random.uniform(k2, (1, 4 * hidden_size), jnp.float32, -k, k)
        b_hh = jax.random.uniform(k3, (1, 4 * hidden_size), jnp.float32, -k, k)
        params["lstm"].append((w_ih, w_hh, b_ih + b_hh))
    kf = 1.0 / np.sqrt(hidden_size)
    params["fc_w"] = jax.random.uniform(keys[-2], (hidden_size, num_classes),
                                        jnp.float32, -kf, kf)
    params["fc_b"] = jax.random.uniform(keys[-1], (1, num_classes),
                                        jnp.float32, -kf, kf)
    return params


# ----------------------------------------------------------------------------
# Pure-JAX reference (for correctness check).
# ----------------------------------------------------------------------------
def reference_forward(x, params):
    x_seq = jnp.transpose(x, (1, 0, 2)).astype(jnp.float32)
    for (w_ih, w_hh, b) in params["lstm"]:
        T, B, _ = x_seq.shape
        H = w_hh.shape[0]
        h = jnp.zeros((B, H), jnp.float32)
        c = jnp.zeros((B, H), jnp.float32)
        outs = []
        for t in range(T):
            gates = x_seq[t] @ w_ih + h @ w_hh + b
            i_g = jax.nn.sigmoid(gates[:, 0 * H:1 * H])
            f_g = jax.nn.sigmoid(gates[:, 1 * H:2 * H])
            g_g = jnp.tanh(gates[:, 2 * H:3 * H])
            o_g = jax.nn.sigmoid(gates[:, 3 * H:4 * H])
            c = f_g * c + i_g * g_g
            h = o_g * jnp.tanh(c)
            outs.append(h)
        x_seq = jnp.stack(outs, axis=0)
    return x_seq[-1] @ params["fc_w"] + params["fc_b"]


if __name__ == "__main__":
    # Small, module-consistent shapes.
    batch, seq_len = 2, 8
    input_size, hidden_size, num_layers, num_classes = 16, 32, 2, 4

    key = jax.random.PRNGKey(0)
    kx, kp = jax.random.split(key)
    x = jax.random.normal(kx, (batch, seq_len, input_size), jnp.float32)
    params = init_params(kp, input_size, hidden_size, num_layers, num_classes)

    logits = lstm_classifier_forward(x, params)
    logits = jax.block_until_ready(logits)

    ref = reference_forward(x, params)
    np.testing.assert_allclose(np.asarray(logits), np.asarray(ref),
                               rtol=1e-4, atol=1e-4)

    assert logits.shape == (batch, num_classes)
    print("KERNEL_OK")
</pallas_src>

<mosaic_0001>
module attributes {stable_mosaic.version = 11 : i64} {
  func.func @_in_proj_kernel(%arg0: memref<64x16xf32, #tpu.memory_space<vmem>>, %arg1: memref<16x128xf32, #tpu.memory_space<vmem>>, %arg2: memref<1x128xf32, #tpu.memory_space<vmem>>, %arg3: memref<64x128xf32, #tpu.memory_space<vmem>>) attributes {dimension_semantics = [], scalar_prefetch = 0 : i64, scratch_operands = 0 : i64, tpu.core_type = #tpu.core_type<tc>} {
    %c0 = arith.constant 0 : index
    %c0_0 = arith.constant 0 : index
    %0 = vector.load %arg0[%c0, %c0_0] : memref<64x16xf32, #tpu.memory_space<vmem>>, vector<64x16xf32>
    %c0_1 = arith.constant 0 : index
    %c0_2 = arith.constant 0 : index
    %1 = vector.load %arg1[%c0_1, %c0_2] : memref<16x128xf32, #tpu.memory_space<vmem>>, vector<16x128xf32>
    %cst = arith.constant dense<0.000000e+00> : vector<64x128xf32>
    %2 = tpu.matmul %0, %1, %cst {dimension_numbers = #tpu.dot_dimension_numbers<[1], [0], [0], [1], [0, 0, 1, 1], [], []>} : vector<64x16xf32>, vector<16x128xf32>, vector<64x128xf32> -> vector<64x128xf32>
    %c0_3 = arith.constant 0 : index
    %c0_4 = arith.constant 0 : index
    %3 = vector.load %arg2[%c0_3, %c0_4] : memref<1x128xf32, #tpu.memory_space<vmem>>, vector<1x128xf32>
    %4 = vector.broadcast %3 : vector<1x128xf32> to vector<64x128xf32>
    %5 = arith.addf %2, %4 : vector<64x128xf32>
    %c0_5 = arith.constant 0 : index
    %c0_6 = arith.constant 0 : index
    %6 = vector.load %arg3[%c0_5, %c0_6] : memref<64x128xf32, #tpu.memory_space<vmem>>, vector<64x128xf32>
    tpu.vector_store %arg3[%c0_5, %c0_6], %5 {strides = array<i32>} : memref<64x128xf32, #tpu.memory_space<vmem>>, vector<64x128xf32>,
    return
  }
}

</mosaic_0001>

<llo_original>
// kernel: tpu_custom_call.1
$region0: #{tpu_custom_call.1}
  #allocation0 [shape = 'u32[]', space=smem, size = 0x4, offset = 0x4, fixed_abs, tag = 'smem constant byte address 0x4 - core index']
  #allocation1 [shape = 'u32[144,128]{1,0:T(1,128)}', space=vmem, size = 0x12000, scoped, tag = 'internal scratch']
  %s0 = inlined_call_operand.vmem [shape: f32[64,16], index: 0, kind: input, shape index: {}]
  %s1 = inlined_call_operand.vmem [shape: f32[16,128], index: 1, kind: input, shape index: {}]
  %s2 = inlined_call_operand.vmem [shape: f32[1,128], index: 2, kind: input, shape index: {}]
  %s3 = inlined_call_operand.hbm [shape: f32[64,128], index: 3, kind: output, shape index: {}]
  %s4 = sld [smem:[#allocation0]]
  $region22: #{tpu_custom_call.1} parent=0
    _
  %s6 = ssub.s32 1, %s4
  %s7 = scalar_select 0, %s6, %s4
  $region1: #{tpu_custom_call.1} parent=0
    #allocation2 [shape = 'u8[32768]{0}', space=vmem, size = 0x8000, scoped, tag = 'output window, operand 0, single buffered']
    #allocation3 [shape = 's32[1]{0}', space=sflag, size = 0x4, scoped, tag = 'scoped memory for tpu_custom_call.1']
    %8 = vsyncpa [#allocation3], 0
    // Predicated region
    $region2: #{tpu_custom_call.1} parent=1 // pred_check
      _
    $region3: #{tpu_custom_call.1} parent=1 // pred_check_branch
      %10 = sbr.rel (0) target = $region5
    $region4: #{tpu_custom_call.1} parent=1 // pred_region
      _
    $region5: #{tpu_custom_call.1} parent=1 // pred_fallthru
      _
    // Predicated region
    $region6: #{tpu_custom_call.1} parent=1 // pred_check
      _
    $region7: #{tpu_custom_call.1} parent=1 // pred_check_branch
      %12 = sbr.rel (0) target = $region9
    $region8: #{tpu_custom_call.1} parent=1 // pred_region
      _
    $region9: #{tpu_custom_call.1} parent=1 // pred_fallthru
      _
    // Predicated region
    $region10: #{tpu_custom_call.1} parent=1 // pred_check
      _
    $region11: #{tpu_custom_call.1} parent=1 // pred_check_branch
      %14 = sbr.rel (0) target = $region13
    $region12: #{tpu_custom_call.1} parent=1 // pred_region
      _
    $region13: #{tpu_custom_call.1} parent=1 // pred_fallthru
      _
    %v15 = vld [vmem:[%s0] sm:$0xff]
    %v16 = vld [vmem:[%s0 + $0x8] sm:$0xff]
    %v17 = vld [vmem:[%s0 + $0x10] sm:$0xff]
    %v18 = vld [vmem:[%s0 + $0x18] sm:$0xff]
    %v19 = vld [vmem:[%s0 + $0x20] sm:$0xff]
    %v20 = vld [vmem:[%s0 + $0x28] sm:$0xff]
    %v21 = vld [vmem:[%s0 + $0x30] sm:$0xff]
    %v22 = vld [vmem:[%s0 + $0x38] sm:$0xff]
    %v23 = vld [vmem:[%s1] sm:$0xff]
    %v24 = vld [vmem:[%s1 + $0x8] sm:$0xff]
    %v25 = vld [vmem:[%s2] sm:$0x1]
    %v27 = vlaneseq
    %v28 = vshrl.u32 %v27, 7
    %v29 = vsub.s32 0, %v28
    %v30 = vrot.slane %v25, %v29
    %vm32 = vcmask 130048
    %v34 = vsel %vm32, %v15, 0
    %v37 = vsel %vm32, %v16, 0
    %v40 = vsel %vm32, %v17, 0
    %v43 = vsel %vm32, %v18, 0
    %v46 = vsel %vm32, %v19, 0
    %v49 = vsel %vm32, %v20, 0
    %v52 = vsel %vm32, %v21, 0
    %v55 = vsel %vm32, %v22, 0
    %57 = vmatprep.subr.mxu0 0.0
    %58 = vmatpush1.msra.mxu0 %v23
    %59 = vmatprep.subr.mxu0 0.0
    %60 = vmatpush1.msra.mxu0 %v24
    %61 = vmatprep.subr.mxu0 0.0
    %62 = vmatpush1.msra.mxu0 0.0
    %63 = vmatprep.subr.mxu0 0.0
    %64 = vmatpush1.msra.mxu0 0.0
    %65 = vmatprep.subr.mxu0 0.0
    %66 = vmatpush1.msra.mxu0 0.0
    %67 = vmatprep.subr.mxu0 0.0
    %68 = vmatpush1.msra.mxu0 0.0
    %69 = vmatprep.subr.mxu0 0.0
    %70 = vmatpush1.msra.mxu0 0.0
    %71 = vmatprep.subr.mxu0 0.0
    %72 = vmatpush1.msra.mxu0 0.0
    %73 = vmatprep.subr.mxu0 0.0
    %74 = vmatpush1.msra.mxu0 0.0
    %75 = vmatprep.subr.mxu0 0.0
    %76 = vmatpush1.msra.mxu0 0.0
    %77 = vmatprep.subr.mxu0 0.0
    %78 = vmatpush1.msra.mxu0 0.0
    %79 = vmatprep.subr.mxu0 0.0
    %80 = vmatpush1.msra.mxu0 0.0
    %81 = vmatprep.subr.mxu0 0.0
    %82 = vmatpush1.msra.mxu0 0.0
    %83 = vmatprep.subr.mxu0 0.0
    %84 = vmatpush1.msra.mxu0 0.0
    %85 = vmatprep.subr.mxu0 0.0
    %86 = vmatpush1.msra.mxu0 0.0
    %87 = vmatprep.subr.mxu0 0.0
    %88 = vmatpush1.msra.mxu0 0.0
    %89 = vmatprep.subr.mxu0 0.0
    %90 = vmatpush1.msra.mxu0 0.0
    %91 = vmatprep.subr.mxu0 0.0
    %92 = vmatpush1.msra.mxu0 0.0
    %93 = vmatprep.subr.mxu0 0.0
    %94 = vmatpush1.msra.mxu0 0.0
    %95 = vmatprep.subr.mxu0 0.0
    %96 = vmatpush1.msra.mxu0 0.0
    %97 = vmatprep.subr.mxu0 0.0
    %98 = vmatpush1.msra.mxu0 0.0
    %99 = vmatprep.subr.mxu0 0.0
    %100 = vmatpush1.msra.mxu0 0.0
    %101 = vmatprep.subr.mxu0 0.0
    %102 = vmatpush1.msra.mxu0 0.0
    %103 = vmatprep.subr.mxu0 0.0
    %104 = vmatpush1.msra.mxu0 0.0
    %105 = vmatprep.subr.mxu0 0.0
    %106 = vmatpush1.msra.mxu0 0.0
    %107 = vmatprep.subr.mxu0 0.0
    %108 = vmatpush1.msra.mxu0 0.0
    %109 = vmatprep.subr.mxu0 0.0
    %110 = vmatpush1.msra.mxu0 0.0
    %111 = vmatprep.subr.mxu0 0.0
    %112 = vmatpush1.msra.mxu0 0.0
    %113 = vmatprep.subr.mxu0 0.0
    %114 = vmatpush1.msra.mxu0 0.0
    %115 = vmatprep.subr.mxu0 0.0
    %116 = vmatpush1.msra.mxu0 0.0
    %117 = vmatprep.subr.mxu0 0.0
    %118 = vmatpush1.msra.mxu0 0.0
    %119 = vmatprep.subr.mxu0 0.0
    %120 = vmatpush1.msra.mxu0 0.0
    %121 = vmatprep.mubr.f32.mxu0 0.0
    %122 = vmatmul.mubr.f32.gmra.mrb[0].mxu0 %v34
    %v123 = vpop.f32.mrb[0].mxu0
    %v124 = vadd.f32 %v30, %v123
    %v125 = vpop.f32.mrb[0].mxu0
    %126 = vmatprep.mubr.f32.mxu0 0.0
    %127 = vmatmul.mubr.f32.gmra.mrb[0].mxu0 %v37
    %v128 = vpop.f32.mrb[0].mxu0
    %v129 = vadd.f32 %v30, %v128
    %v130 = vpop.f32.mrb[0].mxu0
    %131 = vmatprep.mubr.f32.mxu0 0.0
    %132 = vmatmul.mubr.f32.gmra.mrb[0].mxu0 %v40
    %v133 = vpop.f32.mrb[0].mxu0
    %v134 = vadd.f32 %v30, %v133
    %v135 = vpop.f32.mrb[0].mxu0
    %136 = vmatprep.mubr.f32.mxu0 0.0
    %137 = vmatmul.mubr.f32.gmra.mrb[0].mxu0 %v43
    %v138 = vpop.f32.mrb[0].mxu0
    %v139 = vadd.f32 %v30, %v138
    %v140 = vpop.f32.mrb[0].mxu0
    %141 = vmatprep.mubr.f32.mxu0 0.0
    %142 = vmatmul.mubr.f32.gmra.mrb[0].mxu0 %v46
    %v143 = vpop.f32.mrb[0].mxu0
    %v144 = vadd.f32 %v30, %v143
    %v145 = vpop.f32.mrb[0].mxu0
    %146 = vmatprep.mubr.f32.mxu0 0.0
    %147 = vmatmul.mubr.f32.gmra.mrb[0].mxu0 %v49
    %v148 = vpop.f32.mrb[0].mxu0
    %v149 = vadd.f32 %v30, %v148
    %v150 = vpop.f32.mrb[0].mxu0
    %151 = vmatprep.mubr.f32.mxu0 0.0
    %152 = vmatmul.mubr.f32.gmra.mrb[0].mxu0 %v52
    %v153 = vpop.f32.mrb[0].mxu0
    %v154 = vadd.f32 %v30, %v153
    %v155 = vpop.f32.mrb[0].mxu0
    %156 = vmatprep.mubr.f32.mxu0 0.0
    %157 = vmatmul.mubr.f32.gmra.mrb[0].mxu0 %v55
    %v158 = vpop.f32.mrb[0].mxu0
    %v159 = vadd.f32 %v30, %v158
    %v160 = vpop.f32.mrb[0].mxu0
    %161 = vdwg.mxu0
    %162 = vst [vmem:[#allocation2] sm:$0xff] %v124
    %163 = vst [vmem:[#allocation2 + $0x8] sm:$0xff] %v129
    %164 = vst [vmem:[#allocation2 + $0x10] sm:$0xff] %v134
    %165 = vst [vmem:[#allocation2 + $0x18] sm:$0xff] %v139
    %166 = vst [vmem:[#allocation2 + $0x20] sm:$0xff] %v144
    %167 = vst [vmem:[#allocation2 + $0x28] sm:$0xff] %v149
    %168 = vst [vmem:[#allocation2 + $0x30] sm:$0xff] %v154
    %169 = vst [vmem:[#allocation2 + $0x38] sm:$0xff] %v159
    // Predicated region
    $region14: #{tpu_custom_call.1} parent=1 // pred_check
      _
    $region15: #{tpu_custom_call.1} parent=1 // pred_check_branch
      %171 = sbr.rel (0) target = $region17
    $region16: #{tpu_custom_call.1} parent=1 // pred_region
      %s173 = ssub.s32 1024, 1024
      %174 = vsyncadd [#allocation3], %s173
      %s175 = sshll.u32 [#allocation2], 4
      %s176 = int_to_ptr.vmem [resolvable:$true] %s175
      %181 = dma.vmem_to_hbm [thread:$0]  %s176, 1024, %s3, [#allocation3], 128, 128, 8
    $region17: #{tpu_custom_call.1} parent=1 // pred_fallthru
      _
    // Predicated region
    $region18: #{tpu_custom_call.1} parent=1 // pred_check
      _
    $region19: #{tpu_custom_call.1} parent=1 // pred_check_branch
      %183 = sbr.rel (0) target = $region21
    $region20: #{tpu_custom_call.1} parent=1 // pred_region
      %184 = dma.done [#allocation3], 1024
    $region21: #{tpu_custom_call.1} parent=1 // pred_fallthru
      _
    %185 = vsyncpa [#allocation3], 1

</llo_original>
